<compile_context>
chip_gen: v7x
topology: tpu7x:2x2x1
jax: 0.10.0
libtpu: 0.0.40
codegen_flags: <defaults>
</compile_context>

<pallas_src>
import functools

import jax
import jax.numpy as jnp
from jax import lax
from jax.experimental import pallas as pl
from jax.experimental.pallas import tpu as pltpu

EPS = 1e-5  # nn.InstanceNorm2d default eps (affine=False, biased variance)


def _round_up(v, m):
    return ((v + m - 1) // m) * m


def _taps(d):
    # output parity d -> ((input row/col shift, kernel tap index), ...) for k=4, s=2, p=1
    return ((0, 1), (-1, 3)) if d == 0 else ((0, 2), (1, 0))


def _vmem_capacity_bytes():
    try:
        cap = getattr(pltpu.get_tpu_info(), "vmem_capacity_bytes", None)
        if cap:
            return int(cap)
    except Exception:
        pass
    return 64 * 1024 * 1024  # conservative default (v7x per-core VMEM)


def _choose_cgroups(n_batch, c_out, vmem_need, budget):
    """Number of channel groups (extra 'parallel' grid axis)."""
    # Candidate group counts: per-group channel count must stay a multiple of 8 so the
    # phase-pooling epilogue slices and the output block stay sublane-aligned.
    cands = [g for g in range(1, c_out + 1)
             if c_out % g == 0 and (g == 1 or (c_out // g) % 8 == 0)]
    n_cg = cands[-1]                       # fall back to the maximum split
    for g in cands:
        if vmem_need(c_out // g) <= budget:
            n_cg = g
            break
    # v7x has 2 TensorCores: with a single batch the batch-only parallel axis leaves one
    # idle.  Split channels only when each group still fills the MXU M dim (>=256 rows).
    if n_batch == 1 and n_cg == 1:
        for g in cands:
            if g >= 2 and 4 * (c_out // g) >= 256:
                n_cg = g
                break
    return n_cg


def _unet_up_kernel(w_ref, x_ref, m_ref, o_ref, *,
                    cg, wc, lc_pad, k, k_pad, inv_count):
    # w_ref: (4*cg, k_pad)        bf16 fused phase weights for this channel group
    # x_ref: (1, C_in, Lext_pad)  bf16 flattened halo canvas of x
    # m_ref: (1, lc_pad)          f32 validity mask (1 on real HxW output positions)
    # o_ref: (1, 4*cg, lc_pad)    normalized+ReLU phase-major output over the canvas
    xv = x_ref[0]                                     # (C_in, Lext_pad)
    base = wc + 1
    views = [xv[:, base + sh * wc + sw: base + sh * wc + sw + lc_pad]
             for sh in (-1, 0, 1) for sw in (-1, 0, 1)]
    if k_pad > k:                                     # zero rows: bf16 sublane packing
        views.append(jnp.zeros((k_pad - k, lc_pad), xv.dtype))
    patch = jnp.concatenate(views, axis=0)            # (k_pad, lc_pad) bf16, in VMEM

    y = jnp.dot(w_ref[...], patch,
                preferred_element_type=jnp.float32)   # (4*cg, lc_pad) f32

    mask = m_ref[...]                                 # (1, lc_pad)
    # two-pass InstanceNorm stats, pooled over the 4 phases of each channel
    rs1 = jnp.sum(y * mask, axis=1, keepdims=True)    # (4*cg, 1)
    s1 = rs1[0:cg] + rs1[cg:2 * cg] + rs1[2 * cg:3 * cg] + rs1[3 * cg:4 * cg]
    mean = s1 * inv_count                             # (cg, 1)
    cen = y - jnp.tile(mean, (4, 1))
    rs2 = jnp.sum(cen * cen * mask, axis=1, keepdims=True)
    s2 = rs2[0:cg] + rs2[cg:2 * cg] + rs2[2 * cg:3 * cg] + rs2[3 * cg:4 * cg]
    inv_std = lax.rsqrt(s2 * inv_count + EPS)         # (cg, 1)
    o_ref[0] = jnp.maximum(cen * jnp.tile(inv_std, (4, 1)), 0.0).astype(o_ref.dtype)


@jax.jit
def unet_up_forward(x, skip, weight):
    """UNetUp forward.

    x:      (N, C_in, H, W)        NCHW (PyTorch convention)
    skip:   (N, C_skip, 2H, 2W)
    weight: (C_in, C_out, 4, 4)    PyTorch ConvTranspose2d weight layout
    returns (N, C_out + C_skip, 2H, 2W)
    """
    N, C_in, H, W = x.shape
    C_out = weight.shape[1]
    H2, W2 = 2 * H, 2 * W
    Hc, Wc = H + 2, W + 2                 # 1-pixel halo canvas
    Lc = Hc * Wc
    Lc_pad = _round_up(Lc, 128)           # lane-dense matmul N dim
    halo = Wc + 1                         # flat halo so all 9 shifts are in range
    Lext_pad = _round_up(Lc_pad + 2 * halo, 128)
    K = 9 * C_in
    K_pad = _round_up(K, 16)              # bf16 sublane packing
    out_dtype = x.dtype
    out_bytes = jnp.dtype(out_dtype).itemsize

    # ---- generation-aware VMEM budget (v5e/v6e: 128 MiB, v7x: 64 MiB per core)
    vmem_cap = _vmem_capacity_bytes()
    budget = int(vmem_cap * 0.55)

    def vmem_need(cg):
        m = 4 * cg
        return (2 * C_in * Lext_pad * 2        # x canvas block (double-buffered, bf16)
                + 2 * m * K_pad * 2            # weight block (double-buffered, bf16)
                + 2 * m * Lc_pad * out_bytes   # output block (double-buffered)
                + 2 * Lc_pad * 4               # mask block
                + K_pad * Lc_pad * 2           # in-kernel patch temporary (bf16)
                + 2 * m * Lc_pad * 4)          # f32 matmul result + centered temporary

    n_cg = _choose_cgroups(N, C_out, vmem_need, budget)
    Cg = C_out // n_cg
    # TODO(synk): at extreme resolutions where even the max channel split exceeds the
    # budget, a spatial (L) grid axis with carried sum/sumsq scratch (2-kernel split for
    # the InstanceNorm stats) would be needed; not implemented here.

    # ---- bf16 halo canvas of x, flattened, with a (Wc+1) flat halo so every (+/-1,+/-1)
    # shifted view used by the transposed conv is a contiguous flat slice.
    xb = x.astype(jnp.bfloat16)
    xc = jnp.pad(xb, ((0, 0), (0, 0), (1, 1), (1, 1))).reshape(N, C_in, Lc)
    xc = jnp.pad(xc, ((0, 0), (0, 0), (halo, Lext_pad - Lc - halo)))

    # ---- validity mask over the flattened canvas (1 on the real HxW output positions)
    lidx = jnp.arange(Lc_pad, dtype=jnp.int32)
    rows, cols = lidx // Wc, lidx % Wc
    mask = (((rows >= 1) & (rows <= H) & (cols >= 1) & (cols <= W))
            .astype(jnp.float32).reshape(1, Lc_pad))

    # ---- fused phase weights: rows group-major (group, phase, channel-in-group),
    # cols shift-major (g9 = (sh+1)*3 + (sw+1), then ci).
    wt = jnp.zeros((4, C_out, 9, C_in), jnp.float32)
    for dh in (0, 1):
        for dw in (0, 1):
            p = dh * 2 + dw
            for (sh, kh) in _taps(dh):
                for (sw, kw) in _taps(dw):
                    g9 = (sh + 1) * 3 + (sw + 1)
                    wt = wt.at[p, :, g9, :].set(weight[:, :, kh, kw].T)
    w9 = wt.reshape(4, n_cg, Cg, K).transpose(1, 0, 2, 3).reshape(4 * C_out, K)
    if K_pad != K:
        w9 = jnp.pad(w9, ((0, 0), (0, K_pad - K)))
    w9 = w9.astype(jnp.bfloat16)

    kernel = functools.partial(
        _unet_up_kernel, cg=Cg, wc=Wc, lc_pad=Lc_pad, k=K, k_pad=K_pad,
        inv_count=1.0 / (4 * H * W))

    out_ph = pl.pallas_call(
        kernel,
        out_shape=jax.ShapeDtypeStruct((N, 4 * C_out, Lc_pad), out_dtype),
        grid_spec=pltpu.PrefetchScalarGridSpec(
            num_scalar_prefetch=0,
            grid=(N, n_cg),
            in_specs=[
                pl.BlockSpec((4 * Cg, K_pad), lambda n, g: (g, 0)),
                pl.BlockSpec((1, C_in, Lext_pad), lambda n, g: (n, 0, 0)),
                pl.BlockSpec((1, Lc_pad), lambda n, g: (0, 0)),
            ],
            out_specs=pl.BlockSpec((1, 4 * Cg, Lc_pad), lambda n, g: (n, g, 0)),
        ),
        compiler_params=pltpu.CompilerParams(
            dimension_semantics=("parallel", "parallel"),
            vmem_limit_bytes=int(vmem_cap * 0.85),
        ),
    )(w9, xc, mask)

    # ---- drop the canvas border, interleave the 4 phases into (2H, 2W), concat skip.
    # TODO(synk): the dw (lane) interleave could be fused in-kernel with the
    # 2xbf16->u32 bitcast-pack trick to remove one output-tensor HBM round trip.
    y = out_ph[:, :, :Lc].reshape(N, n_cg, 2, 2, Cg, Hc, Wc)
    y = y[:, :, :, :, :, 1:1 + H, 1:1 + W]                       # (n,g,dh,dw,j,h,w)
    y = jnp.transpose(y, (0, 1, 4, 5, 2, 6, 3)).reshape(N, C_out, H2, W2)
    return jnp.concatenate([y, skip.astype(y.dtype)], axis=1)


def unet_up_reference(x, skip, weight):
    """Pure-JAX f32 reference (ConvTranspose2d via lhs-dilated conv)."""
    rhs = jnp.transpose(weight[:, :, ::-1, ::-1], (1, 0, 2, 3))  # (C_out, C_in, 4, 4)
    y = lax.conv_general_dilated(
        x, rhs, window_strides=(1, 1), padding=[(2, 2), (2, 2)],
        lhs_dilation=(2, 2), dimension_numbers=("NCHW", "OIHW", "NCHW"))
    mean = jnp.mean(y, axis=(2, 3), keepdims=True)
    var = jnp.mean(jnp.square(y - mean), axis=(2, 3), keepdims=True)
    y = jnp.maximum((y - mean) * lax.rsqrt(var + EPS), 0.0)
    return jnp.concatenate([y, skip], axis=1)


if __name__ == "__main__":
    # small shapes consistent with the module
    N, C_in, C_out, H, W = 2, 8, 8, 16, 16
    key = jax.random.PRNGKey(0)
    kx, ks, kw = jax.random.split(key, 3)

    x = jax.random.normal(kx, (N, C_in, H, W), dtype=jnp.float32)
    skip = jax.random.normal(ks, (N, C_out, 2 * H, 2 * W), dtype=jnp.float32)
    weight = 0.1 * jax.random.normal(kw, (C_in, C_out, 4, 4), dtype=jnp.float32)

    out = jax.block_until_ready(unet_up_forward(x, skip, weight))
    ref = unet_up_reference(x, skip, weight)

    assert out.shape == (N, 2 * C_out, 2 * H, 2 * W), out.shape
    # bf16 MXU operands with f32 accumulation -> loosened tolerance vs f32 reference
    assert jnp.allclose(out, ref, atol=3e-2, rtol=3e-2), "mismatch vs reference"

    print("KERNEL_OK")
</pallas_src>

<mosaic_0001>
module attributes {stable_mosaic.version = 11 : i64} {
  func.func @_unet_up_kernel(%arg0: i32, %arg1: i32, %arg2: memref<32x80xbf16, #tpu.memory_space<vmem>>, %arg3: memref<1x8x512xbf16, #tpu.memory_space<vmem>>, %arg4: memref<1x384xf32, #tpu.memory_space<vmem>>, %arg5: memref<1x32x384xf32, #tpu.memory_space<vmem>>) attributes {dimension_semantics = [#tpu.dimension_semantics<parallel>, #tpu.dimension_semantics<parallel>], iteration_bounds = array<i64: 2, 1>, scalar_prefetch = 0 : i64, scratch_operands = 0 : i64, tpu.core_type = #tpu.core_type<tc>, window_params = [{transform_indices = @transform_0, window_bounds = array<i64: 32, 80>}, {transform_indices = @transform_1, window_bounds = array<i64: 1, 8, 512>}, {pipeline_mode = #tpu.pipeline_mode<synchronous>, transform_indices = @transform_2, window_bounds = array<i64: 1, 384>}, {transform_indices = @transform_3, window_bounds = array<i64: 1, 32, 384>}]} {
    %c0 = arith.constant 0 : index
    %c0_0 = arith.constant 0 : index
    %c0_1 = arith.constant 0 : index
    %0 = vector.load %arg3[%c0, %c0_0, %c0_1] : memref<1x8x512xbf16, #tpu.memory_space<vmem>>, vector<1x8x512xbf16>
    %1 = vector.shape_cast %0 : vector<1x8x512xbf16> to vector<8x512xbf16>
    %2 = vector.extract_strided_slice %1 {offsets = [0, 0], sizes = [8, 384], strides = [1, 1]} : vector<8x512xbf16> to vector<8x384xbf16>
    %3 = vector.extract_strided_slice %1 {offsets = [0, 1], sizes = [8, 384], strides = [1, 1]} : vector<8x512xbf16> to vector<8x384xbf16>
    %4 = vector.extract_strided_slice %1 {offsets = [0, 2], sizes = [8, 384], strides = [1, 1]} : vector<8x512xbf16> to vector<8x384xbf16>
    %5 = vector.extract_strided_slice %1 {offsets = [0, 18], sizes = [8, 384], strides = [1, 1]} : vector<8x512xbf16> to vector<8x384xbf16>
    %6 = vector.extract_strided_slice %1 {offsets = [0, 19], sizes = [8, 384], strides = [1, 1]} : vector<8x512xbf16> to vector<8x384xbf16>
    %7 = vector.extract_strided_slice %1 {offsets = [0, 20], sizes = [8, 384], strides = [1, 1]} : vector<8x512xbf16> to vector<8x384xbf16>
    %8 = vector.extract_strided_slice %1 {offsets = [0, 36], sizes = [8, 384], strides = [1, 1]} : vector<8x512xbf16> to vector<8x384xbf16>
    %9 = vector.extract_strided_slice %1 {offsets = [0, 37], sizes = [8, 384], strides = [1, 1]} : vector<8x512xbf16> to vector<8x384xbf16>
    %10 = vector.extract_strided_slice %1 {offsets = [0, 38], sizes = [8, 384], strides = [1, 1]} : vector<8x512xbf16> to vector<8x384xbf16>
    %cst = arith.constant 0.000000e+00 : bf16
    %11 = vector.broadcast %cst : bf16 to vector<8x384xbf16>
    %12 = tpu.concatenate %2, %3, %4, %5, %6, %7, %8, %9, %10, %11 in 0 : vector<8x384xbf16>, vector<8x384xbf16>, vector<8x384xbf16>, vector<8x384xbf16>, vector<8x384xbf16>, vector<8x384xbf16>, vector<8x384xbf16>, vector<8x384xbf16>, vector<8x384xbf16>, vector<8x384xbf16> -> vector<80x384xbf16>
    %c0_2 = arith.constant 0 : index
    %c0_3 = arith.constant 0 : index
    %13 = vector.load %arg2[%c0_2, %c0_3] : memref<32x80xbf16, #tpu.memory_space<vmem>>, vector<32x80xbf16>
    %cst_4 = arith.constant dense<0.000000e+00> : vector<32x384xf32>
    %14 = tpu.matmul %13, %12, %cst_4 {dimension_numbers = #tpu.dot_dimension_numbers<[1], [0], [0], [1], [0, 0, 1, 1], [], []>} : vector<32x80xbf16>, vector<80x384xbf16>, vector<32x384xf32> -> vector<32x384xf32>
    %c0_5 = arith.constant 0 : index
    %c0_6 = arith.constant 0 : index
    %15 = vector.load %arg4[%c0_5, %c0_6] : memref<1x384xf32, #tpu.memory_space<vmem>>, vector<1x384xf32>
    %16 = vector.broadcast %15 : vector<1x384xf32> to vector<32x384xf32>
    %17 = arith.mulf %14, %16 : vector<32x384xf32>
    %cst_7 = arith.constant dense<0.000000e+00> : vector<32xf32>
    %18 = vector.multi_reduction <add>, %17, %cst_7 [1] : vector<32x384xf32> to vector<32xf32>
    %19 = vector.shape_cast %18 : vector<32xf32> to vector<32x1xf32>
    %20 = vector.extract_strided_slice %19 {offsets = [0, 0], sizes = [8, 1], strides = [1, 1]} : vector<32x1xf32> to vector<8x1xf32>
    %21 = vector.extract_strided_slice %19 {offsets = [8, 0], sizes = [8, 1], strides = [1, 1]} : vector<32x1xf32> to vector<8x1xf32>
    %22 = arith.addf %20, %21 : vector<8x1xf32>
    %23 = vector.extract_strided_slice %19 {offsets = [16, 0], sizes = [8, 1], strides = [1, 1]} : vector<32x1xf32> to vector<8x1xf32>
    %24 = arith.addf %22, %23 : vector<8x1xf32>
    %25 = vector.extract_strided_slice %19 {offsets = [24, 0], sizes = [8, 1], strides = [1, 1]} : vector<32x1xf32> to vector<8x1xf32>
    %26 = arith.addf %24, %25 : vector<8x1xf32>
    %cst_8 = arith.constant 9.765625E-4 : f32
    %27 = vector.broadcast %cst_8 : f32 to vector<8x1xf32>
    %28 = arith.mulf %26, %27 : vector<8x1xf32>
    %29 = tpu.concatenate %28, %28, %28, %28 in 0 : vector<8x1xf32>, vector<8x1xf32>, vector<8x1xf32>, vector<8x1xf32> -> vector<32x1xf32>
    %30 = vector.broadcast %29 : vector<32x1xf32> to vector<32x384xf32>
    %31 = arith.subf %14, %30 : vector<32x384xf32>
    %32 = arith.mulf %31, %31 : vector<32x384xf32>
    %33 = vector.broadcast %15 : vector<1x384xf32> to vector<32x384xf32>
    %34 = arith.mulf %32, %33 : vector<32x384xf32>
    %cst_9 = arith.constant dense<0.000000e+00> : vector<32xf32>
    %35 = vector.multi_reduction <add>, %34, %cst_9 [1] : vector<32x384xf32> to vector<32xf32>
    %36 = vector.shape_cast %35 : vector<32xf32> to vector<32x1xf32>
    %37 = vector.extract_strided_slice %36 {offsets = [0, 0], sizes = [8, 1], strides = [1, 1]} : vector<32x1xf32> to vector<8x1xf32>
    %38 = vector.extract_strided_slice %36 {offsets = [8, 0], sizes = [8, 1], strides = [1, 1]} : vector<32x1xf32> to vector<8x1xf32>
    %39 = arith.addf %37, %38 : vector<8x1xf32>
    %40 = vector.extract_strided_slice %36 {offsets = [16, 0], sizes = [8, 1], strides = [1, 1]} : vector<32x1xf32> to vector<8x1xf32>
    %41 = arith.addf %39, %40 : vector<8x1xf32>
    %42 = vector.extract_strided_slice %36 {offsets = [24, 0], sizes = [8, 1], strides = [1, 1]} : vector<32x1xf32> to vector<8x1xf32>
    %43 = arith.addf %41, %42 : vector<8x1xf32>
    %cst_10 = arith.constant 9.765625E-4 : f32
    %44 = vector.broadcast %cst_10 : f32 to vector<8x1xf32>
    %45 = arith.mulf %43, %44 : vector<8x1xf32>
    %cst_11 = arith.constant 9.99999974E-6 : f32
    %46 = vector.broadcast %cst_11 : f32 to vector<8x1xf32>
    %47 = arith.addf %45, %46 : vector<8x1xf32>
    %48 = math.rsqrt %47 : vector<8x1xf32>
    %49 = tpu.concatenate %48, %48, %48, %48 in 0 : vector<8x1xf32>, vector<8x1xf32>, vector<8x1xf32>, vector<8x1xf32> -> vector<32x1xf32>
    %50 = vector.broadcast %49 : vector<32x1xf32> to vector<32x384xf32>
    %51 = arith.mulf %31, %50 : vector<32x384xf32>
    %cst_12 = arith.constant 0.000000e+00 : f32
    %52 = vector.broadcast %cst_12 : f32 to vector<32x384xf32>
    %53 = arith.maximumf %51, %52 : vector<32x384xf32>
    %c0_13 = arith.constant 0 : index
    %c0_14 = arith.constant 0 : index
    %c0_15 = arith.constant 0 : index
    %54 = vector.load %arg5[%c0_13, %c0_14, %c0_15] : memref<1x32x384xf32, #tpu.memory_space<vmem>>, vector<1x32x384xf32>
    %55 = vector.shape_cast %54 : vector<1x32x384xf32> to vector<32x384xf32>
    %56 = vector.shape_cast %53 : vector<32x384xf32> to vector<1x32x384xf32>
    tpu.vector_store %arg5[%c0_13, %c0_14, %c0_15], %56 {strides = array<i32>} : memref<1x32x384xf32, #tpu.memory_space<vmem>>, vector<1x32x384xf32>,
    return
  }
  func.func @transform_0(%arg0: i32, %arg1: i32) -> (i32, i32) {
    %c0_i32 = arith.constant 0 : i32
    %c0_i32_0 = arith.constant 0 : i32
    return %arg1, %c0_i32 : i32, i32
  }
  func.func @transform_1(%arg0: i32, %arg1: i32) -> (i32, i32, i32) {
    %c0_i32 = arith.constant 0 : i32
    %c0_i32_0 = arith.constant 0 : i32
    %c0_i32_1 = arith.constant 0 : i32
    return %arg0, %c0_i32, %c0_i32_0 : i32, i32, i32
  }
  func.func @transform_2(%arg0: i32, %arg1: i32) -> (i32, i32) {
    %c0_i32 = arith.constant 0 : i32
    %c0_i32_0 = arith.constant 0 : i32
    %c0_i32_1 = arith.constant 0 : i32
    return %c0_i32, %c0_i32_0 : i32, i32
  }
  func.func @transform_3(%arg0: i32, %arg1: i32) -> (i32, i32, i32) {
    %c0_i32 = arith.constant 0 : i32
    %c0_i32_0 = arith.constant 0 : i32
    return %arg0, %arg1, %c0_i32 : i32, i32, i32
  }
}

</mosaic_0001>

<llo_original>
// kernel: unet_up_forward.1
$region0: #{unet_up_forward.1}
  #allocation0 [shape = 'u32[]', space=smem, size = 0x4, offset = 0x4, fixed_abs, tag = 'smem constant byte address 0x4 - core index']
  #allocation1 [shape = 'u32[144,128]{1,0:T(1,128)}', space=vmem, size = 0x12000, scoped, tag = 'internal scratch']
  %s0 = inlined_call_operand.vmem [shape: bf16[32,80], index: 0, kind: input, shape index: {}]
  %s1 = inlined_call_operand.vmem [shape: bf16[2,8,512], index: 1, kind: input, shape index: {}]
  %s2 = inlined_call_operand.vmem [shape: f32[1,384], index: 2, kind: input, shape index: {}]
  %s3 = inlined_call_operand.vmem [shape: f32[2,32,384], index: 3, kind: output, shape index: {}]
  %s4 = sld [smem:[#allocation0]]
  $region45: #{unet_up_forward.1} parent=0
    _
  %s6 = ssub.s32 1, %s4
  %s7 = scalar_select 0, %s6, %s4
  loop: start=0, step=1, limit=4
  $region2: #{unet_up_forward.1} parent=0 // loop_pre_header
    _
  $region3: #{unet_up_forward.1} parent=0 // loop_header
    %s9 = sphi 0, %s13
    %p10 = scmp.ge.s32.totalorder %s9, 4
    %s16 = sphi 0, %s28
    %s17 = sphi 0, %s24
    %s18 = sphi 0, %s16
    %s19 = sphi 0, %s17
    %s20 = sphi 0, %s18
    %s21 = sphi 0, %s19
    %s31 = sphi 0, %s33
    %s34 = sphi 0, %s31
    %s35 = sphi 0, %s34
    %s51 = sphi 0, %s35
    %s57 = sphi 0, %s59
    %s60 = sphi 0, %s57
    %s61 = sphi 0, %s60
    %s77 = sphi 0, %s61
    %s81 = sphi 0, %s81
    %s83 = sphi 0, %s81
    %s84 = sphi 0, %s83
    %s98 = sphi 0, %s84
    %s106 = sphi 0, %s108
    %s109 = sphi 0, %s106
    %s110 = sphi 0, %s109
    %s126 = sphi 0, %s110
  $region4: #{unet_up_forward.1} parent=0 // loop_header_branch
    %12 = sbr.rel (%p10) target = $region8
  $region5: #{unet_up_forward.1} parent=0 // loop_body
    %s14 = ssub.s32 %s9, 1
    %s15 = ssub.s32 %s9, 2
    %s22 = sadd.s32 1, %s17
    %p23 = scmp.ge.s32.totalorder %s22, 1
    %s24 = scalar_select %p23, 0, %s22
    %s25 = sadd.s32 1, %s16
    %s26 = scalar_select %p23, %s25, %s16
    %p27 = scmp.ge.s32.totalorder %s26, 2
    %s28 = scalar_select %p27, 0, %s26
    %s29 = ssub.s32 %s17, %s24
    %p30 = scmp.eq.s32.totalorder %s29, 0
    %s32 = sadd.s32 %s31, 1
    %s33 = scalar_select %p30, %s31, %s32
    %p36 = pneg %p30
    %p37 = scmp.eq.s32.totalorder %s9, 1
    %p38 = por %p36, %p37
    %p39 = scmp.ne.s32.totalorder %s31, %s34
    %p40 = scmp.eq.s32.totalorder %s9, 0
    %p41 = por %p39, %p40
    %p42 = scmp.ne.s32.totalorder %s31, %s34
    %p43 = scmp.eq.s32.totalorder %s14, 1
    %p44 = por %p42, %p43
    %p45 = scmp.ne.s32.totalorder %s34, %s35
    %p46 = scmp.eq.s32.totalorder %s14, 0
    %p47 = por %p45, %p46
    %p48 = scmp.ne.s32.totalorder %s34, %s35
    %p49 = scmp.eq.s32.totalorder %s15, 1
    %p50 = por %p48, %p49
    %p52 = scmp.ne.s32.totalorder %s35, %s51
    %p53 = scmp.eq.s32.totalorder %s15, 0
    %p54 = por %p52, %p53
    %s55 = ssub.s32 %s16, %s28
    %p56 = scmp.eq.s32.totalorder %s55, 0
    %s58 = sadd.s32 %s57, 1
    %s59 = scalar_select %p56, %s57, %s58
    %p62 = pneg %p56
    %p63 = scmp.eq.s32.totalorder %s9, 1
    %p64 = por %p62, %p63
    %p65 = scmp.ne.s32.totalorder %s57, %s60
    %p66 = scmp.eq.s32.totalorder %s9, 0
    %p67 = por %p65, %p66
    %p68 = scmp.ne.s32.totalorder %s57, %s60
    %p69 = scmp.eq.s32.totalorder %s14, 1
    %p70 = por %p68, %p69
    %p71 = scmp.ne.s32.totalorder %s60, %s61
    %p72 = scmp.eq.s32.totalorder %s14, 0
    %p73 = por %p71, %p72
    %p74 = scmp.ne.s32.totalorder %s60, %s61
    %p75 = scmp.eq.s32.totalorder %s15, 1
    %p76 = por %p74, %p75
    %p78 = scmp.ne.s32.totalorder %s61, %s77
    %p79 = scmp.eq.s32.totalorder %s15, 0
    %p80 = por %p78, %p79
    %s82 = sadd.s32 %s81, 1
    %p85 = scmp.eq.s32.totalorder %s9, 1
    %p86 = scmp.ne.s32.totalorder %s81, %s83
    %p87 = scmp.eq.s32.totalorder %s9, 0
    %p88 = por %p86, %p87
    %p89 = scmp.ne.s32.totalorder %s81, %s83
    %p90 = scmp.eq.s32.totalorder %s14, 1
    %p91 = por %p89, %p90
    %p92 = scmp.ne.s32.totalorder %s83, %s84
    %p93 = scmp.eq.s32.totalorder %s14, 0
    %p94 = por %p92, %p93
    %p95 = scmp.ne.s32.totalorder %s83, %s84
    %p96 = scmp.eq.s32.totalorder %s15, 1
    %p97 = por %p95, %p96
    %p99 = scmp.ne.s32.totalorder %s84, %s98
    %p100 = scmp.eq.s32.totalorder %s15, 0
    %p101 = por %p99, %p100
    %s102 = ssub.s32 %s16, %s28
    %s103 = ssub.s32 %s17, %s24
    %s104 = sor.u32 %s102, %s103
    %p105 = scmp.eq.s32.totalorder %s104, 0
    %s107 = sadd.s32 %s106, 1
    %s108 = scalar_select %p105, %s106, %s107
    %p111 = pneg %p105
    %p112 = scmp.eq.s32.totalorder %s9, 1
    %p113 = por %p111, %p112
    %p114 = scmp.ne.s32.totalorder %s106, %s109
    %p115 = scmp.eq.s32.totalorder %s9, 0
    %p116 = por %p114, %p115
    %p117 = scmp.ne.s32.totalorder %s106, %s109
    %p118 = scmp.eq.s32.totalorder %s14, 1
    %p119 = por %p117, %p118
    %p120 = scmp.ne.s32.totalorder %s109, %s110
    %p121 = scmp.eq.s32.totalorder %s14, 0
    %p122 = por %p120, %p121
    %p123 = scmp.ne.s32.totalorder %s109, %s110
    %p124 = scmp.eq.s32.totalorder %s15, 1
    %p125 = por %p123, %p124
    %p127 = scmp.ne.s32.totalorder %s110, %s126
    %p128 = scmp.eq.s32.totalorder %s15, 0
    %p129 = por %p127, %p128
    %p130 = scmp.le.s32.totalorder 1, %s9
    %p131 = scmp.lt.s32.totalorder %s9, 3
    %p132 = pnand %p130, %p131
    %p133 = pneg %p132
    // Predicated region
    $region9: #{unet_up_forward.1} parent=5 // pred_check
      _
    $region10: #{unet_up_forward.1} parent=5 // pred_check_branch
      %135 = sbr.rel (%p132) target = $region12
    $region11: #{unet_up_forward.1} parent=5 // pred_region
      %s136 = ssub.s32 %s9, 1
      // Predicated region
      $region13: #{unet_up_forward.1} parent=11 // pred_check
        %p137 = pneg %p47
      $region14: #{unet_up_forward.1} parent=11 // pred_check_branch
        %139 = sbr.rel (%p137) target = $region16
      $region15: #{unet_up_forward.1} parent=11 // pred_region
        %s140 = smul.u32 4, %s19
        %p141 = scmp.lt.s32.totalorder %s140, 3
        %s142 = scalar_select %p141, %s140, 3
        %s143 = smul.addr %s142, 4
        %s144 = scalar_lea.vmem %s0, %s143
        %s145 = smul.u32 4, %s19
      $region16: #{unet_up_forward.1} parent=11 // pred_fallthru
        _
      // Predicated region
      $region17: #{unet_up_forward.1} parent=11 // pred_check
        %p146 = pneg %p94
      $region18: #{unet_up_forward.1} parent=11 // pred_check_branch
        %148 = sbr.rel (%p146) target = $region20
      $region19: #{unet_up_forward.1} parent=11 // pred_region
        _
      $region20: #{unet_up_forward.1} parent=11 // pred_fallthru
        _
    $region12: #{unet_up_forward.1} parent=5 // pred_fallthru
      _
    %p149 = scmp.lt.s32.totalorder %s9, 2
    // Predicated region
    $region21: #{unet_up_forward.1} parent=5 // pred_check
      %p150 = pneg %p149
    $region22: #{unet_up_forward.1} parent=5 // pred_check_branch
      %152 = sbr.rel (%p150) target = $region24
    $region23: #{unet_up_forward.1} parent=5 // pred_region
      // Predicated region
      $region25: #{unet_up_forward.1} parent=23 // pred_check
        %p153 = pneg %p67
      $region26: #{unet_up_forward.1} parent=23 // pred_check_branch
        %155 = sbr.rel (%p153) target = $region28
      $region27: #{unet_up_forward.1} parent=23 // pred_region
        %p156 = scmp.lt.s32.totalorder %s16, 1
        %s157 = scalar_select %p156, %s16, 1
        %s158 = smul.addr %s157, 4
        %s159 = smul.addr %s158, 4
        %s160 = scalar_lea.vmem %s1, %s159
      $region28: #{unet_up_forward.1} parent=23 // pred_fallthru
        _
    $region24: #{unet_up_forward.1} parent=5 // pred_fallthru
      _
    %p161 = scmp.le.s32.totalorder 1, %s9
    %p162 = scmp.lt.s32.totalorder %s9, 3
    %p163 = pnand %p161, %p162
    %p164 = pneg %p163
    // Predicated region
    $region29: #{unet_up_forward.1} parent=5 // pred_check
      _
    $region30: #{unet_up_forward.1} parent=5 // pred_check_branch
      %166 = sbr.rel (%p163) target = $region32
    $region31: #{unet_up_forward.1} parent=5 // pred_region
      %s167 = ssub.s32 %s9, 1
      %s168 = smul.u32 4, %s19
      %p169 = scmp.lt.s32.totalorder %s168, 3
      %s170 = scalar_select %p169, %s168, 3
      %s171 = smul.addr %s170, 4
      %s172 = scalar_lea.vmem %s0, %s171
      %p173 = pneg %p47
      %p174 = pneg %p44
      %p175 = scmp.lt.s32.totalorder %s18, 1
      %s176 = scalar_select %p175, %s18, 1
      %s177 = smul.addr %s176, 4
      %s178 = smul.addr %s177, 4
      %s179 = scalar_lea.vmem %s1, %s178
      %p180 = pneg %p73
      %p181 = pneg %p70
      %p182 = pneg %p94
      %p183 = pneg %p91
      %p184 = pneg %p122
      %p185 = pneg %p119
      %s186 = smul.u32 4, %s19
      %p187 = scmp.lt.s32.totalorder %s18, 1
      %s188 = scalar_select %p187, %s18, 1
      %p189 = scmp.lt.s32.totalorder %s186, 3
      %s190 = scalar_select %p189, %s186, 3
      %s191 = smul.addr %s190, 3
      %s192 = smul.addr %s188, 12
      %s193 = sadd.s32 %s191, %s192
      %s194 = smul.addr %s193, 8
      %s195 = scalar_lea.vmem %s3, %s194
      %s196 = smul.u32 4, %s19
      %p197 = scmp.lt.s32.totalorder %s196, 3
      %s198 = scalar_select %p197, %s196, 3
      %s199 = smul.addr %s198, 4
      %s200 = scalar_lea.vmem %s0, %s199
      %s201 = smul.u32 4, %s19
      %p202 = scmp.lt.s32.totalorder %s18, 1
      %s203 = scalar_select %p202, %s18, 1
      %s204 = smul.addr %s203, 4
      %s205 = smul.addr %s204, 4
      %s206 = scalar_lea.vmem %s1, %s205
      %s207 = smul.u32 4, %s19
      %p208 = scmp.lt.s32.totalorder %s18, 1
      %s209 = scalar_select %p208, %s18, 1
      %p210 = scmp.lt.s32.totalorder %s207, 3
      %s211 = scalar_select %p210, %s207, 3
      %s212 = smul.addr %s211, 3
      %s213 = smul.addr %s209, 12
      %s214 = sadd.s32 %s212, %s213
      %s215 = smul.addr %s214, 8
      %s216 = scalar_lea.vmem %s3, %s215
      %s217 = smul.u32 4, %s19
      %v219 = vld [vmem:[%s206] sm:$0xff]
      %v220 = vld [vmem:[%s206 + $0x8] sm:$0xff]
      %v223 = vunpack.c.l.b16 %v219
      %v224 = vunpack.c.h.b16 %v219
      %v225 = vunpack.c.l.b16 %v220
      %v226 = vpack.c.b16 %v223, %v223
      %v227 = vpack.c.b16 %v224, %v224
      %v228 = vpack.c.b16 %v225, %v225
      %v229 = vunpack.c.h.b16 %v220
      %v230 = vpack.c.b16 %v229, %v229
      %231 = vrot.lane.b32.xlu0 %v226, 127
      %v232 = vpop.permute.xlu0 %231
      %233 = vrot.lane.b32.xlu0 %v227, 127
      %v234 = vpop.permute.xlu0 %233
      %235 = vrot.lane.b32.xlu0 %v228, 127
      %v236 = vpop.permute.xlu0 %235
      %237 = vrot.lane.b32.xlu0 %v230, 127
      %v238 = vpop.permute.xlu0 %237
      %vm239 = vcmask 1039360
      %v240 = vsel %vm239, %v232, %v234
      %v241 = vsel %vm239, %v234, %v236
      %v242 = vsel %vm239, %v236, %v238
      %243 = vrot.lane.b32.xlu0 %v226, 126
      %v244 = vpop.permute.xlu0 %243
      %245 = vrot.lane.b32.xlu0 %v227, 126
      %v246 = vpop.permute.xlu0 %245
      %247 = vrot.lane.b32.xlu0 %v228, 126
      %v248 = vpop.permute.xlu0 %247
      %249 = vrot.lane.b32.xlu0 %v230, 126
      %v250 = vpop.permute.xlu0 %249
      %vm251 = vcmask 1031168
      %v252 = vsel %vm251, %v244, %v246
      %v253 = vsel %vm251, %v246, %v248
      %v254 = vsel %vm251, %v248, %v250
      %255 = vrot.lane.b32.xlu0 %v226, 110
      %v256 = vpop.permute.xlu0 %255
      %257 = vrot.lane.b32.xlu0 %v227, 110
      %v258 = vpop.permute.xlu0 %257
      %259 = vrot.lane.b32.xlu0 %v228, 110
      %v260 = vpop.permute.xlu0 %259
      %261 = vrot.lane.b32.xlu0 %v230, 110
      %v262 = vpop.permute.xlu0 %261
      %vm263 = vcmask 900096
      %v264 = vsel %vm263, %v256, %v258
      %v265 = vsel %vm263, %v258, %v260
      %v266 = vsel %vm263, %v260, %v262
      %267 = vrot.lane.b32.xlu0 %v226, 109
      %v268 = vpop.permute.xlu0 %267
      %269 = vrot.lane.b32.xlu0 %v227, 109
      %v270 = vpop.permute.xlu0 %269
      %271 = vrot.lane.b32.xlu0 %v228, 109
      %v272 = vpop.permute.xlu0 %271
      %273 = vrot.lane.b32.xlu0 %v230, 109
      %v274 = vpop.permute.xlu0 %273
      %vm275 = vcmask 891904
      %v276 = vsel %vm275, %v268, %v270
      %v277 = vsel %vm275, %v270, %v272
      %v278 = vsel %vm275, %v272, %v274
      %279 = vrot.lane.b32.xlu0 %v226, 108
      %v280 = vpop.permute.xlu0 %279
      %281 = vrot.lane.b32.xlu0 %v227, 108
      %v282 = vpop.permute.xlu0 %281
      %283 = vrot.lane.b32.xlu0 %v228, 108
      %v284 = vpop.permute.xlu0 %283
      %285 = vrot.lane.b32.xlu0 %v230, 108
      %v286 = vpop.permute.xlu0 %285
      %vm287 = vcmask 883712
      %v288 = vsel %vm287, %v280, %v282
      %v289 = vsel %vm287, %v282, %v284
      %v290 = vsel %vm287, %v284, %v286
      %291 = vrot.lane.b32.xlu0 %v226, 92
      %v292 = vpop.permute.xlu0 %291
      %293 = vrot.lane.b32.xlu0 %v227, 92
      %v294 = vpop.permute.xlu0 %293
      %295 = vrot.lane.b32.xlu0 %v228, 92
      %v296 = vpop.permute.xlu0 %295
      %297 = vrot.lane.b32.xlu0 %v230, 92
      %v298 = vpop.permute.xlu0 %297
      %vm299 = vcmask 752640
      %v300 = vsel %vm299, %v292, %v294
      %v301 = vsel %vm299, %v294, %v296
      %v302 = vsel %vm299, %v296, %v298
      %303 = vrot.lane.b32.xlu0 %v226, 91
      %v304 = vpop.permute.xlu0 %303
      %305 = vrot.lane.b32.xlu0 %v227, 91
      %v306 = vpop.permute.xlu0 %305
      %307 = vrot.lane.b32.xlu0 %v228, 91
      %v308 = vpop.permute.xlu0 %307
      %309 = vrot.lane.b32.xlu0 %v230, 91
      %v310 = vpop.permute.xlu0 %309
      %vm311 = vcmask 744448
      %v312 = vsel %vm311, %v304, %v306
      %v313 = vsel %vm311, %v306, %v308
      %v314 = vsel %vm311, %v308, %v310
      %315 = vrot.lane.b32.xlu0 %v226, 90
      %v316 = vpop.permute.xlu0 %315
      %317 = vrot.lane.b32.xlu0 %v227, 90
      %v318 = vpop.permute.xlu0 %317
      %319 = vrot.lane.b32.xlu0 %v228, 90
      %v320 = vpop.permute.xlu0 %319
      %321 = vrot.lane.b32.xlu0 %v230, 90
      %v322 = vpop.permute.xlu0 %321
      %vm323 = vcmask 736256
      %v324 = vsel %vm323, %v316, %v318
      %v325 = vsel %vm323, %v318, %v320
      %v326 = vsel %vm323, %v320, %v322
      %vm327 = vcmask 1043456
      %v330 = vsel %vm327, %v226, %v240
      %v334 = vsel %vm327, %v227, %v241
      %v338 = vsel %vm327, %v228, %v242
      %v342 = vsel %vm327, %v252, %v264
      %v346 = vsel %vm327, %v253, %v265
      %v350 = vsel %vm327, %v254, %v266
      %v354 = vsel %vm327, %v276, %v288
      %v358 = vsel %vm327, %v277, %v289
      %v362 = vsel %vm327, %v278, %v290
      %v366 = vsel %vm327, %v300, %v312
      %v370 = vsel %vm327, %v301, %v313
      %v374 = vsel %vm327, %v302, %v314
      %v378 = vsel %vm327, %v324, 0
      %v381 = vsel %vm327, %v325, 0
      %v384 = vsel %vm327, %v326, 0
      %v386 = vld [vmem:[%s200] sm:$0xf]
      %v387 = vld [vmem:[%s200 + $0x4] sm:$0xf]
      %v388 = vld [vmem:[%s200 + $0x8] sm:$0xf]
      %v389 = vld [vmem:[%s200 + $0xc] sm:$0xf]
      %v394 = vunpack.c.l.b16 %v386
      %v395 = vunpack.c.l.b16 %v387
      %v396 = vunpack.c.l.b16 %v388
      %v397 = vunpack.c.l.b16 %v389
      %v398 = vpack.c.b16 %v395, %v394
      %v399 = vpack.c.b16 %v397, %v396
      %vm400 = vcmask 654336
      %v402 = vsel %vm400, %v398, 0
      %v405 = vsel %vm400, %v399, 0
      %407 = vmatprep.subr.bf16.mxu0 %v334
      %408 = vmatpush1.bf16.msra.mxu0 %v330
      %409 = vmatprep.subr.bf16.mxu0 %v346
      %410 = vmatpush1.bf16.msra.mxu0 %v342
      %411 = vmatprep.subr.bf16.mxu0 %v358
      %412 = vmatpush1.bf16.msra.mxu0 %v354
      %413 = vmatprep.subr.bf16.mxu0 %v370
      %414 = vmatpush1.bf16.msra.mxu0 %v366
      %415 = vmatprep.subr.bf16.mxu0 %v381
      %416 = vmatpush1.bf16.msra.mxu0 %v378
      %417 = vmatprep.subr.bf16.mxu0 0
      %418 = vmatpush1.bf16.msra.mxu0 0
      %419 = vmatprep.subr.bf16.mxu0 0
      %420 = vmatpush1.bf16.msra.mxu0 0
      %421 = vmatprep.subr.bf16.mxu0 0
      %422 = vmatpush1.bf16.msra.mxu0 0
      %423 = vmatprep.subr.bf16.mxu0 0
      %424 = vmatpush1.bf16.msra.mxu0 0
      %425 = vmatprep.subr.bf16.mxu0 0
      %426 = vmatpush1.bf16.msra.mxu0 0
      %427 = vmatprep.subr.bf16.mxu0 0
      %428 = vmatpush1.bf16.msra.mxu0 0
      %429 = vmatprep.subr.bf16.mxu0 0
      %430 = vmatpush1.bf16.msra.mxu0 0
      %431 = vmatprep.subr.bf16.mxu0 0
      %432 = vmatpush1.bf16.msra.mxu0 0
      %433 = vmatprep.subr.bf16.mxu0 0
      %434 = vmatpush1.bf16.msra.mxu0 0
      %435 = vmatprep.subr.bf16.mxu0 0
      %436 = vmatpush1.bf16.msra.mxu0 0
      %437 = vmatprep.subr.bf16.mxu0 0
      %438 = vmatpush1.bf16.msra.mxu0 0
      %439 = vmatprep.mubr.bf16.mxu0 0
      %440 = vmatmul.mubr.bf16.gmra.mrb[0].mxu0 %v402
      %v441 = vpop.f32.mrb[0].mxu0
      %v442 = vadd.f32 0.0, %v441
      %v443 = vpop.f32.mrb[0].mxu0
      %v444 = vadd.f32 0.0, %v443
      %v445 = vpop.f32.mrb[0].mxu0
      %v446 = vadd.f32 0.0, %v445
      %v447 = vpop.f32.mrb[0].mxu0
      %v448 = vadd.f32 0.0, %v447
      %449 = vmatprep.mubr.bf16.mxu0 0
      %450 = vmatmul.mubr.bf16.gmra.mrb[0].mxu0 %v405
      %v451 = vpop.f32.mrb[0].mxu0
      %v452 = vadd.f32 0.0, %v451
      %v453 = vpop.f32.mrb[0].mxu0
      %v454 = vadd.f32 0.0, %v453
      %v455 = vpop.f32.mrb[0].mxu0
      %v456 = vadd.f32 0.0, %v455
      %v457 = vpop.f32.mrb[0].mxu0
      %v458 = vadd.f32 0.0, %v457
      %459 = vdwg.mxu0
      %460 = vmatprep.subr.bf16.mxu0 0
      %461 = vmatpush1.bf16.msra.mxu0 %v338
      %462 = vmatprep.subr.bf16.mxu0 0
      %463 = vmatpush1.bf16.msra.mxu0 %v350
      %464 = vmatprep.subr.bf16.mxu0 0
      %465 = vmatpush1.bf16.msra.mxu0 %v362
      %466 = vmatprep.subr.bf16.mxu0 0
      %467 = vmatpush1.bf16.msra.mxu0 %v374
      %468 = vmatprep.subr.bf16.mxu0 0
      %469 = vmatpush1.bf16.msra.mxu0 %v384
      %470 = vmatprep.subr.bf16.mxu0 0
      %471 = vmatpush1.bf16.msra.mxu0 0
      %472 = vmatprep.subr.bf16.mxu0 0
      %473 = vmatpush1.bf16.msra.mxu0 0
      %474 = vmatprep.subr.bf16.mxu0 0
      %475 = vmatpush1.bf16.msra.mxu0 0
      %476 = vmatprep.subr.bf16.mxu0 0
      %477 = vmatpush1.bf16.msra.mxu0 0
      %478 = vmatprep.subr.bf16.mxu0 0
      %479 = vmatpush1.bf16.msra.mxu0 0
      %480 = vmatprep.subr.bf16.mxu0 0
      %481 = vmatpush1.bf16.msra.mxu0 0
      %482 = vmatprep.subr.bf16.mxu0 0
      %483 = vmatpush1.bf16.msra.mxu0 0
      %484 = vmatprep.subr.bf16.mxu0 0
      %485 = vmatpush1.bf16.msra.mxu0 0
      %486 = vmatprep.subr.bf16.mxu0 0
      %487 = vmatpush1.bf16.msra.mxu0 0
      %488 = vmatprep.subr.bf16.mxu0 0
      %489 = vmatpush1.bf16.msra.mxu0 0
      %490 = vmatprep.subr.bf16.mxu0 0
      %491 = vmatpush1.bf16.msra.mxu0 0
      %492 = vmatprep.mubr.bf16.mxu0 0
      %493 = vmatmul.mubr.bf16.gmra.mrb[0].mxu0 %v402
      %v494 = vpop.f32.mrb[0].mxu0
      %v495 = vadd.f32 0.0, %v494
      %v496 = vpop.f32.mrb[0].mxu0
      %v497 = vpop.f32.mrb[0].mxu0
      %v498 = vadd.f32 0.0, %v497
      %v499 = vpop.f32.mrb[0].mxu0
      %500 = vmatprep.mubr.bf16.mxu0 0
      %501 = vmatmul.mubr.bf16.gmra.mrb[0].mxu0 %v405
      %v502 = vpop.f32.mrb[0].mxu0
      %v503 = vadd.f32 0.0, %v502
      %v504 = vpop.f32.mrb[0].mxu0
      %v505 = vpop.f32.mrb[0].mxu0
      %v506 = vadd.f32 0.0, %v505
      %v507 = vpop.f32.mrb[0].mxu0
      %508 = vdwg.mxu0
      %v509 = vld [vmem:[%s2] sm:$0x7]
      %v511 = vlaneseq
      %v512 = vshrl.u32 %v511, 7
      %v513 = vsub.s32 0, %v512
      %v514 = vrot.slane %v509, %v513
      %v515 = vlaneseq
      %v516 = vshrl.u32 %v515, 7
      %v517 = vsub.s32 1, %v516
      %v518 = vrot.slane %v509, %v517
      %v519 = vlaneseq
      %v520 = vshrl.u32 %v519, 7
      %v521 = vsub.s32 2, %v520
      %v522 = vrot.slane %v509, %v521
      %v526 = vmul.f32 %v442, %v514
      %v527 = vmul.f32 %v444, %v518
      %v528 = vmul.f32 %v495, %v522
      %v529 = vmul.f32 %v446, %v514
      %v530 = vmul.f32 %v448, %v518
      %v531 = vmul.f32 %v498, %v522
      %v532 = vmul.f32 %v452, %v514
      %v533 = vmul.f32 %v454, %v518
      %v534 = vmul.f32 %v503, %v522
      %v535 = vmul.f32 %v456, %v514
      %v536 = vmul.f32 %v458, %v518
      %v537 = vmul.f32 %v506, %v522
      %v538 = vadd.f32 %v526, %v527
      %v539 = vadd.f32 %v538, %v528
      %540 = vadd.xlane.f32.xlu0 %v539
      %v541 = vpop.xlane.xlu0 %540
      %v542 = vadd.f32 %v529, %v530
      %v543 = vadd.f32 %v542, %v531
      %544 = vadd.xlane.f32.xlu0 %v543
      %v545 = vpop.xlane.xlu0 %544
      %v546 = vadd.f32 %v532, %v533
      %v547 = vadd.f32 %v546, %v534
      %548 = vadd.xlane.f32.xlu0 %v547
      %v549 = vpop.xlane.xlu0 %548
      %v550 = vadd.f32 %v535, %v536
      %v551 = vadd.f32 %v550, %v537
      %552 = vadd.xlane.f32.xlu0 %v551
      %v553 = vpop.xlane.xlu0 %552
      %v554 = vadd.f32 %v541, %v545
      %v555 = vadd.f32 %v554, %v549
      %v556 = vadd.f32 %v555, %v553
      %v557 = vmul.f32 %v556, 0.0009765625
      %559 = vset.pattern.permute.xlu0 0
      %560 = vperm.xlu0 %559, %v557
      %v561 = vpop.permute.xlu0 %560
      %v563 = vsub.f32 %v442, %v561
      %v564 = vsub.f32 %v444, %v561
      %v565 = vsub.f32 %v495, %v561
      %v566 = vsub.f32 %v446, %v561
      %v567 = vsub.f32 %v448, %v561
      %v568 = vsub.f32 %v498, %v561
      %v569 = vsub.f32 %v452, %v561
      %v570 = vsub.f32 %v454, %v561
      %v571 = vsub.f32 %v503, %v561
      %v572 = vsub.f32 %v456, %v561
      %v573 = vsub.f32 %v458, %v561
      %v574 = vsub.f32 %v506, %v561
      %v575 = vmul.f32 %v563, %v563
      %v576 = vmul.f32 %v564, %v564
      %v577 = vmul.f32 %v565, %v565
      %v578 = vmul.f32 %v566, %v566
      %v579 = vmul.f32 %v567, %v567
      %v580 = vmul.f32 %v568, %v568
      %v581 = vmul.f32 %v569, %v569
      %v582 = vmul.f32 %v570, %v570
      %v583 = vmul.f32 %v571, %v571
      %v584 = vmul.f32 %v572, %v572
      %v585 = vmul.f32 %v573, %v573
      %v586 = vmul.f32 %v574, %v574
      %v587 = vmul.f32 %v575, %v514
      %v588 = vmul.f32 %v576, %v518
      %v589 = vmul.f32 %v577, %v522
      %v590 = vmul.f32 %v578, %v514
      %v591 = vmul.f32 %v579, %v518
      %v592 = vmul.f32 %v580, %v522
      %v593 = vmul.f32 %v581, %v514
      %v594 = vmul.f32 %v582, %v518
      %v595 = vmul.f32 %v583, %v522
      %v596 = vmul.f32 %v584, %v514
      %v597 = vmul.f32 %v585, %v518
      %v598 = vmul.f32 %v586, %v522
      %v599 = vadd.f32 %v587, %v588
      %v600 = vadd.f32 %v599, %v589
      %601 = vadd.xlane.f32.xlu0 %v600
      %v602 = vpop.xlane.xlu0 %601
      %v603 = vadd.f32 %v590, %v591
      %v604 = vadd.f32 %v603, %v592
      %605 = vadd.xlane.f32.xlu0 %v604
      %v606 = vpop.xlane.xlu0 %605
      %v607 = vadd.f32 %v593, %v594
      %v608 = vadd.f32 %v607, %v595
      %609 = vadd.xlane.f32.xlu0 %v608
      %v610 = vpop.xlane.xlu0 %609
      %v611 = vadd.f32 %v596, %v597
      %v612 = vadd.f32 %v611, %v598
      %613 = vadd.xlane.f32.xlu0 %v612
      %v614 = vpop.xlane.xlu0 %613
      %v615 = vadd.f32 %v602, %v606
      %v616 = vadd.f32 %v615, %v610
      %v617 = vadd.f32 %v616, %v614
      %v618 = vmul.f32 %v617, 0.0009765625
      %v619 = vadd.f32 %v618, 1e-05
      %v620 = vrsqrt.pop %v619
      %622 = vset.pattern.permute.xlu0 0
      %623 = vperm.xlu0 %622, %v620
      %v624 = vpop.permute.xlu0 %623
      %v626 = vmul.f32 %v563, %v624
      %v627 = vmul.f32 %v564, %v624
      %v628 = vmul.f32 %v565, %v624
      %v629 = vmul.f32 %v566, %v624
      %v630 = vmul.f32 %v567, %v624
      %v631 = vmul.f32 %v568, %v624
      %v632 = vmul.f32 %v569, %v624
      %v633 = vmul.f32 %v570, %v624
      %v634 = vmul.f32 %v571, %v624
      %v635 = vmul.f32 %v572, %v624
      %v636 = vmul.f32 %v573, %v624
      %v637 = vmul.f32 %v574, %v624
      %v638 = vmax.f32 %v626, 0.0
      %v639 = vmax.f32 %v627, 0.0
      %v640 = vmax.f32 %v628, 0.0
      %v641 = vmax.f32 %v629, 0.0
      %v642 = vmax.f32 %v630, 0.0
      %v643 = vmax.f32 %v631, 0.0
      %v644 = vmax.f32 %v632, 0.0
      %v645 = vmax.f32 %v633, 0.0
      %v646 = vmax.f32 %v634, 0.0
      %v647 = vmax.f32 %v635, 0.0
      %v648 = vmax.f32 %v636, 0.0
      %v649 = vmax.f32 %v637, 0.0
      %650 = vst [vmem:[%s216] sm:$0xff] %v638
      %651 = vst [vmem:[%s216 + $0x8] sm:$0xff] %v639
      %652 = vst [vmem:[%s216 + $0x10] sm:$0xff] %v640
      %653 = vst [vmem:[%s216 + $0x18] sm:$0xff] %v641
      %654 = vst [vmem:[%s216 + $0x20] sm:$0xff] %v642
      %655 = vst [vmem:[%s216 + $0x28] sm:$0xff] %v643
      %656 = vst [vmem:[%s216 + $0x30] sm:$0xff] %v644
      %657 = vst [vmem:[%s216 + $0x38] sm:$0xff] %v645
      %658 = vst [vmem:[%s216 + $0x40] sm:$0xff] %v646
      %659 = vst [vmem:[%s216 + $0x48] sm:$0xff] %v647
      %660 = vst [vmem:[%s216 + $0x50] sm:$0xff] %v648
      %661 = vst [vmem:[%s216 + $0x58] sm:$0xff] %v649
      %s662 = smul.u32 4, %s19
      %p663 = scmp.lt.s32.totalorder %s18, 1
      %s664 = scalar_select %p663, %s18, 1
      %p665 = scmp.lt.s32.totalorder %s662, 3
      %s666 = scalar_select %p665, %s662, 3
      %s667 = smul.addr %s666, 3
      %s668 = smul.addr %s664, 12
      %s669 = sadd.s32 %s667, %s668
      %s670 = smul.addr %s669, 8
      %s671 = scalar_lea.vmem %s3, %s670
      // Predicated region
      $region33: #{unet_up_forward.1} parent=31 // pred_check
        %p672 = pneg %p119
      $region34: #{unet_up_forward.1} parent=31 // pred_check_branch
        %674 = sbr.rel (%p672) target = $region36
      $region35: #{unet_up_forward.1} parent=31 // pred_region
        %s675 = smul.u32 4, %s19
      $region36: #{unet_up_forward.1} parent=31 // pred_fallthru
        _
    $region32: #{unet_up_forward.1} parent=5 // pred_fallthru
      _
    %p676 = scmp.le.s32.totalorder 2, %s9
    // Predicated region
    $region37: #{unet_up_forward.1} parent=5 // pred_check
      %p677 = pneg %p676
    $region38: #{unet_up_forward.1} parent=5 // pred_check_branch
      %679 = sbr.rel (%p677) target = $region40
    $region39: #{unet_up_forward.1} parent=5 // pred_region
      %s680 = ssub.s32 %s9, 2
      // Predicated region
      $region41: #{unet_up_forward.1} parent=39 // pred_check
        %p681 = pneg %p125
      $region42: #{unet_up_forward.1} parent=39 // pred_check_branch
        %683 = sbr.rel (%p681) target = $region44
      $region43: #{unet_up_forward.1} parent=39 // pred_region
        %s684 = smul.u32 4, %s21
        %p685 = scmp.lt.s32.totalorder %s20, 1
        %s686 = scalar_select %p685, %s20, 1
        %p687 = scmp.lt.s32.totalorder %s684, 3
        %s688 = scalar_select %p687, %s684, 3
        %s689 = smul.addr %s688, 3
        %s690 = smul.addr %s686, 12
        %s691 = sadd.s32 %s689, %s690
        %s692 = smul.addr %s691, 8
        %s693 = scalar_lea.vmem %s3, %s692
      $region44: #{unet_up_forward.1} parent=39 // pred_fallthru
        _
    $region40: #{unet_up_forward.1} parent=5 // pred_fallthru
      _
  $region6: #{unet_up_forward.1} parent=0 // loop_footer
    %s13 = sadd.s32 1, %s9
  $region7: #{unet_up_forward.1} parent=0 // loop_footer_branch
    %8 = sbr.rel target = $region3
  $region8: #{unet_up_forward.1} parent=0 // loop_exit
    _

</llo_original>
